<compile_context>
chip_gen: v6e
topology: v6e:2x2x1
jax: 0.10.0
libtpu: 0.0.40
codegen_flags: <defaults>
</compile_context>

<pallas_src>
import jax
import jax.numpy as jnp
from jax.experimental import pallas as pl
from jax.experimental.pallas import tpu as pltpu


def _largest_divisor_leq(n: int, cap: int) -> int:
    cap = max(1, min(n, cap))
    for d in range(cap, 0, -1):
        if n % d == 0:
            return d
    return 1


def _channel_interaction_kernel(x_ref, w1_ref, b1_ref, w2_ref, b2_ref, o_ref):
    # x_ref / o_ref: (nb, C, t)   streamed pixel tiles (channels on sublanes, pixels on lanes)
    # w1_ref: (Cmid, C)  b1_ref: (Cmid, 1)  w2_ref: (C, Cmid)  b2_ref: (C, 1)   (resident)
    w1 = w1_ref[...]
    b1 = b1_ref[...]
    w2 = w2_ref[...]
    b2 = b2_ref[...]
    nb = x_ref.shape[0]               # small static block constant
    for b in range(nb):
        x = x_ref[b]                                                     # (C, t)
        h = jnp.dot(w1, x, preferred_element_type=jnp.float32) + b1      # 1x1 conv #1
        h = jnp.maximum(h, 0.0)                                          # ReLU
        y = jnp.dot(w2, h, preferred_element_type=jnp.float32) + b2      # 1x1 conv #2
        # sigmoid(y) == 0.5 * tanh(0.5*y) + 0.5  -> single EUP op, keeps divide off the VALU.
        o_ref[b] = (0.5 * jnp.tanh(0.5 * y) + 0.5).astype(o_ref.dtype)   # lane-dense store


def channel_interaction(x_nchw, w1, b1, w2, b2, *,
                        tile_budget_bytes=4 * 1024 * 1024,
                        vmem_limit_cap_bytes=56 * 1024 * 1024):
    """x_nchw: (N, C, H, W). w1: (C//8, C) [PyTorch OIHW squeezed], b1: (C//8,),
    w2: (C, C//8), b2: (C,). Returns (N, C, H, W), same dtype as x.

    tile_budget_bytes sizes the streamed x tile (~4 MiB works on v5e/v6e/v7x; v6e
    with 128 MiB VMEM can push 8-16 MiB, keep <= ~6 MiB on v7x's 64 MiB VMEM)."""
    N, C, H, W = x_nchw.shape
    Cmid = w1.shape[0]
    HW = H * W
    dtype_bytes = jnp.dtype(x_nchw.dtype).itemsize

    # Free reshape (H, W contiguous in NCHW): no extra HBM pass.
    x3 = x_nchw.reshape(N, C, HW)

    # ---- derive (nb, t) from the VMEM budget -------------------------------------
    max_lanes = max(128, tile_budget_bytes // (C * dtype_bytes))
    if HW > max_lanes:
        # Large images: one image per block, lane-tile the HW axis (multiple of 128).
        nb = 1
        t = (max_lanes // 128) * 128
    else:
        # Small images: take the full spatial extent (always a legal block dim) and
        # batch several images per block so each grid step still moves real traffic.
        t = HW
        nb_cap = max(1, tile_budget_bytes // (C * HW * dtype_bytes))
        nb = _largest_divisor_leq(N, nb_cap)

    g_n = N // nb
    g_hw = pl.cdiv(HW, t)
    # v7x shards parallel grid axes over its 2 TensorCores: keep >= 2 grid steps.
    if g_n * g_hw < 2 and N > 1:
        nb = _largest_divisor_leq(N, N // 2)
        g_n = N // nb

    # ---- explicit VMEM budget: 2x(x) + 2x(out) double buffers + f32 intermediates ---
    tile_bytes = nb * C * t * dtype_bytes
    itm_bytes = nb * (C + Cmid) * t * 4
    w_bytes = (2 * Cmid * C + C + Cmid) * 4
    vmem_limit = int(min(vmem_limit_cap_bytes,
                         max(32 * 1024 * 1024,
                             2 * (4 * tile_bytes + itm_bytes + w_bytes))))

    b1_m = b1.reshape(Cmid, 1)
    b2_m = b2.reshape(C, 1)

    # TODO(synk): weights/biases could be single-buffered via pipeline_mode=pl.Buffered(1);
    # skipped (negligible VMEM at these sizes) to keep the lowering path conservative.
    out3 = pl.pallas_call(
        _channel_interaction_kernel,
        out_shape=jax.ShapeDtypeStruct((N, C, HW), x_nchw.dtype),
        grid_spec=pltpu.PrefetchScalarGridSpec(
            num_scalar_prefetch=0,
            grid=(g_n, g_hw),
            in_specs=[
                pl.BlockSpec((nb, C, t), lambda n, i: (n, 0, i)),   # x tile (streamed)
                pl.BlockSpec((Cmid, C), lambda n, i: (0, 0)),       # w1 (resident)
                pl.BlockSpec((Cmid, 1), lambda n, i: (0, 0)),       # b1
                pl.BlockSpec((C, Cmid), lambda n, i: (0, 0)),       # w2
                pl.BlockSpec((C, 1), lambda n, i: (0, 0)),          # b2
            ],
            out_specs=pl.BlockSpec((nb, C, t), lambda n, i: (n, 0, i)),
        ),
        compiler_params=pltpu.CompilerParams(
            dimension_semantics=("parallel", "parallel"),
            vmem_limit_bytes=vmem_limit),
    )(x3, w1, b1_m, w2, b2_m)

    return out3.reshape(N, C, H, W)


def _reference(x_nchw, w1, b1, w2, b2):
    # Pure-JAX reference of the PyTorch forward (1x1 convs as einsums).
    h = jnp.einsum("nchw,mc->nmhw", x_nchw, w1) + b1[None, :, None, None]
    h = jnp.maximum(h, 0.0)
    y = jnp.einsum("nmhw,cm->nchw", h, w2) + b2[None, :, None, None]
    return jax.nn.sigmoid(y)


if __name__ == "__main__":
    key = jax.random.PRNGKey(0)
    N, C, H, W = 2, 32, 16, 16          # channel must be >= 8 for channel // 8
    Cmid = C // 8

    k_x, k_w1, k_b1, k_w2, k_b2 = jax.random.split(key, 5)
    x = jax.random.normal(k_x, (N, C, H, W), dtype=jnp.float32)
    # Deterministic synthetic params (Conv2d 1x1 kernels, OIHW squeezed to OI)
    w1 = jax.random.normal(k_w1, (Cmid, C), dtype=jnp.float32) * 0.1
    b1 = jax.random.normal(k_b1, (Cmid,), dtype=jnp.float32) * 0.1
    w2 = jax.random.normal(k_w2, (C, Cmid), dtype=jnp.float32) * 0.1
    b2 = jax.random.normal(k_b2, (C,), dtype=jnp.float32) * 0.1

    out = channel_interaction(x, w1, b1, w2, b2)
    out = jax.block_until_ready(out)

    ref = _reference(x, w1, b1, w2, b2)
    assert out.shape == (N, C, H, W)
    assert jnp.allclose(out, ref, atol=1e-5, rtol=1e-5), "mismatch vs reference"
    print("KERNEL_OK")
</pallas_src>

<mosaic_0001>
module attributes {stable_mosaic.version = 11 : i64} {
  func.func @_channel_interaction_kernel(%arg0: i32, %arg1: i32, %arg2: memref<1x32x256xf32, #tpu.memory_space<vmem>>, %arg3: memref<4x32xf32, #tpu.memory_space<vmem>>, %arg4: memref<4x1xf32, #tpu.memory_space<vmem>>, %arg5: memref<32x4xf32, #tpu.memory_space<vmem>>, %arg6: memref<32x1xf32, #tpu.memory_space<vmem>>, %arg7: memref<1x32x256xf32, #tpu.memory_space<vmem>>) attributes {dimension_semantics = [#tpu.dimension_semantics<parallel>, #tpu.dimension_semantics<parallel>], iteration_bounds = array<i64: 2, 1>, scalar_prefetch = 0 : i64, scratch_operands = 0 : i64, tpu.core_type = #tpu.core_type<tc>, window_params = [{transform_indices = @transform_0, window_bounds = array<i64: 1, 32, 256>}, {pipeline_mode = #tpu.pipeline_mode<synchronous>, transform_indices = @transform_1, window_bounds = array<i64: 4, 32>}, {pipeline_mode = #tpu.pipeline_mode<synchronous>, transform_indices = @transform_2, window_bounds = array<i64: 4, 1>}, {pipeline_mode = #tpu.pipeline_mode<synchronous>, transform_indices = @transform_3, window_bounds = array<i64: 32, 4>}, {pipeline_mode = #tpu.pipeline_mode<synchronous>, transform_indices = @transform_4, window_bounds = array<i64: 32, 1>}, {transform_indices = @transform_5, window_bounds = array<i64: 1, 32, 256>}]} {
    %c0 = arith.constant 0 : index
    %c0_0 = arith.constant 0 : index
    %0 = vector.load %arg3[%c0, %c0_0] : memref<4x32xf32, #tpu.memory_space<vmem>>, vector<4x32xf32>
    %c0_1 = arith.constant 0 : index
    %c0_2 = arith.constant 0 : index
    %1 = vector.load %arg4[%c0_1, %c0_2] : memref<4x1xf32, #tpu.memory_space<vmem>>, vector<4x1xf32>
    %c0_3 = arith.constant 0 : index
    %c0_4 = arith.constant 0 : index
    %2 = vector.load %arg5[%c0_3, %c0_4] : memref<32x4xf32, #tpu.memory_space<vmem>>, vector<32x4xf32>
    %c0_5 = arith.constant 0 : index
    %c0_6 = arith.constant 0 : index
    %3 = vector.load %arg6[%c0_5, %c0_6] : memref<32x1xf32, #tpu.memory_space<vmem>>, vector<32x1xf32>
    %c0_7 = arith.constant 0 : index
    %c0_8 = arith.constant 0 : index
    %c0_9 = arith.constant 0 : index
    %4 = vector.load %arg2[%c0_7, %c0_8, %c0_9] : memref<1x32x256xf32, #tpu.memory_space<vmem>>, vector<1x32x256xf32>
    %5 = vector.shape_cast %4 : vector<1x32x256xf32> to vector<32x256xf32>
    %cst = arith.constant dense<0.000000e+00> : vector<4x256xf32>
    %6 = tpu.matmul %0, %5, %cst {dimension_numbers = #tpu.dot_dimension_numbers<[1], [0], [0], [1], [0, 0, 1, 1], [], []>} : vector<4x32xf32>, vector<32x256xf32>, vector<4x256xf32> -> vector<4x256xf32>
    %7 = vector.broadcast %1 : vector<4x1xf32> to vector<4x256xf32>
    %8 = arith.addf %6, %7 : vector<4x256xf32>
    %cst_10 = arith.constant 0.000000e+00 : f32
    %9 = vector.broadcast %cst_10 : f32 to vector<4x256xf32>
    %10 = arith.maximumf %8, %9 : vector<4x256xf32>
    %cst_11 = arith.constant dense<0.000000e+00> : vector<32x256xf32>
    %11 = tpu.matmul %2, %10, %cst_11 {dimension_numbers = #tpu.dot_dimension_numbers<[1], [0], [0], [1], [0, 0, 1, 1], [], []>} : vector<32x4xf32>, vector<4x256xf32>, vector<32x256xf32> -> vector<32x256xf32>
    %12 = vector.broadcast %3 : vector<32x1xf32> to vector<32x256xf32>
    %13 = arith.addf %11, %12 : vector<32x256xf32>
    %cst_12 = arith.constant 5.000000e-01 : f32
    %14 = vector.broadcast %cst_12 : f32 to vector<32x256xf32>
    %15 = arith.mulf %14, %13 : vector<32x256xf32>
    %16 = math.tanh %15 : vector<32x256xf32>
    %cst_13 = arith.constant 5.000000e-01 : f32
    %17 = vector.broadcast %cst_13 : f32 to vector<32x256xf32>
    %18 = arith.mulf %17, %16 : vector<32x256xf32>
    %cst_14 = arith.constant 5.000000e-01 : f32
    %19 = vector.broadcast %cst_14 : f32 to vector<32x256xf32>
    %20 = arith.addf %18, %19 : vector<32x256xf32>
    %c0_15 = arith.constant 0 : index
    %c0_16 = arith.constant 0 : index
    %c0_17 = arith.constant 0 : index
    %21 = vector.load %arg7[%c0_15, %c0_16, %c0_17] : memref<1x32x256xf32, #tpu.memory_space<vmem>>, vector<1x32x256xf32>
    %22 = vector.shape_cast %21 : vector<1x32x256xf32> to vector<32x256xf32>
    %23 = vector.shape_cast %20 : vector<32x256xf32> to vector<1x32x256xf32>
    tpu.vector_store %arg7[%c0_15, %c0_16, %c0_17], %23 {strides = array<i32>} : memref<1x32x256xf32, #tpu.memory_space<vmem>>, vector<1x32x256xf32>,
    return
  }
  func.func @transform_0(%arg0: i32, %arg1: i32) -> (i32, i32, i32) {
    %c0_i32 = arith.constant 0 : i32
    %c0_i32_0 = arith.constant 0 : i32
    return %arg0, %c0_i32, %arg1 : i32, i32, i32
  }
  func.func @transform_1(%arg0: i32, %arg1: i32) -> (i32, i32) {
    %c0_i32 = arith.constant 0 : i32
    %c0_i32_0 = arith.constant 0 : i32
    %c0_i32_1 = arith.constant 0 : i32
    return %c0_i32, %c0_i32_0 : i32, i32
  }
  func.func @transform_2(%arg0: i32, %arg1: i32) -> (i32, i32) {
    %c0_i32 = arith.constant 0 : i32
    %c0_i32_0 = arith.constant 0 : i32
    %c0_i32_1 = arith.constant 0 : i32
    return %c0_i32, %c0_i32_0 : i32, i32
  }
  func.func @transform_3(%arg0: i32, %arg1: i32) -> (i32, i32) {
    %c0_i32 = arith.constant 0 : i32
    %c0_i32_0 = arith.constant 0 : i32
    %c0_i32_1 = arith.constant 0 : i32
    return %c0_i32, %c0_i32_0 : i32, i32
  }
  func.func @transform_4(%arg0: i32, %arg1: i32) -> (i32, i32) {
    %c0_i32 = arith.constant 0 : i32
    %c0_i32_0 = arith.constant 0 : i32
    %c0_i32_1 = arith.constant 0 : i32
    return %c0_i32, %c0_i32_0 : i32, i32
  }
  func.func @transform_5(%arg0: i32, %arg1: i32) -> (i32, i32, i32) {
    %c0_i32 = arith.constant 0 : i32
    %c0_i32_0 = arith.constant 0 : i32
    return %arg0, %c0_i32, %arg1 : i32, i32, i32
  }
}

</mosaic_0001>

<llo_original>
// kernel: tpu_custom_call.1
$region0: #{tpu_custom_call.1}
  #allocation0 [shape = 'u32[]', space=smem, size = 0x4, offset = 0x4, fixed_abs, tag = 'smem constant byte address 0x4 - core index']
  #allocation1 [shape = 'u32[144,128]{1,0:T(1,128)}', space=vmem, size = 0x12000, scoped, tag = 'internal scratch']
  %s0 = inlined_call_operand.hbm [shape: f32[2,32,256], index: 0, kind: input, shape index: {}]
  %s1 = inlined_call_operand.vmem [shape: f32[4,32], index: 1, kind: input, shape index: {}]
  %s2 = inlined_call_operand.vmem [shape: f32[4,1], index: 2, kind: input, shape index: {}]
  %s3 = inlined_call_operand.vmem [shape: f32[32,4], index: 3, kind: input, shape index: {}]
  %s4 = inlined_call_operand.vmem [shape: f32[32,1], index: 4, kind: input, shape index: {}]
  %s5 = inlined_call_operand.hbm [shape: f32[2,32,256], index: 5, kind: output, shape index: {}]
  %s6 = sld [smem:[#allocation0]]
  $region57: #{tpu_custom_call.1} parent=0
    _
  %s8 = ssub.s32 1, %s6
  %s9 = scalar_select 0, %s8, %s6
  $region1: #{tpu_custom_call.1} parent=0
    #allocation2 [shape = 'u8[65536]{0}', space=vmem, size = 0x10000, scoped, tag = 'input window, operand 0']
    #allocation3 [shape = 's32[2]{0}', space=sflag, size = 0x8, scoped, tag = 'scoped memory for tpu_custom_call.1']
    #allocation4 [shape = 's32[2]{0}', space=sflag, size = 0x8, scoped, tag = 'scoped memory for tpu_custom_call.1']
    #allocation5 [shape = 'u8[65536]{0}', space=vmem, size = 0x10000, scoped, tag = 'output window, operand 0']
    %10 = vsyncpa [#allocation3], 0
    %s11 = scalar_lea.sflag [#allocation3], 1
    %12 = vsyncpa %s11, 0
    %13 = vsyncpa [#allocation4], 0
    %s14 = scalar_lea.sflag [#allocation4], 1
    %15 = vsyncpa %s14, 0
    loop: start=0, step=1, limit=4
    $region2: #{tpu_custom_call.1} parent=1 // loop_pre_header
      _
    $region3: #{tpu_custom_call.1} parent=1 // loop_header
      %s17 = sphi 0, %s21
      %p18 = scmp.ge.s32.totalorder %s17, 4
      %s24 = sphi 0, %s36
      %s25 = sphi 0, %s32
      %s26 = sphi 0, %s24
      %s27 = sphi 0, %s25
      %s28 = sphi 0, %s26
      %s29 = sphi 0, %s27
      %s41 = sphi 0, %s43
      %s44 = sphi 0, %s41
      %s45 = sphi 0, %s44
      %s61 = sphi 0, %s45
      %s65 = sphi 0, %s65
      %s67 = sphi 0, %s65
      %s68 = sphi 0, %s67
      %s82 = sphi 0, %s68
      %s86 = sphi 0, %s86
      %s88 = sphi 0, %s86
      %s89 = sphi 0, %s88
      %s103 = sphi 0, %s89
      %s107 = sphi 0, %s107
      %s109 = sphi 0, %s107
      %s110 = sphi 0, %s109
      %s124 = sphi 0, %s110
      %s128 = sphi 0, %s128
      %s130 = sphi 0, %s128
      %s131 = sphi 0, %s130
      %s145 = sphi 0, %s131
      %s153 = sphi 0, %s155
      %s156 = sphi 0, %s153
      %s157 = sphi 0, %s156
      %s173 = sphi 0, %s157
    $region4: #{tpu_custom_call.1} parent=1 // loop_header_branch
      %20 = sbr.rel (%p18) target = $region8
    $region5: #{tpu_custom_call.1} parent=1 // loop_body
      %s22 = ssub.s32 %s17, 1
      %s23 = ssub.s32 %s17, 2
      %s30 = sadd.s32 1, %s25
      %p31 = scmp.ge.s32.totalorder %s30, 1
      %s32 = scalar_select %p31, 0, %s30
      %s33 = sadd.s32 1, %s24
      %s34 = scalar_select %p31, %s33, %s24
      %p35 = scmp.ge.s32.totalorder %s34, 2
      %s36 = scalar_select %p35, 0, %s34
      %s37 = ssub.s32 %s24, %s36
      %s38 = ssub.s32 %s25, %s32
      %s39 = sor.u32 %s37, %s38
      %p40 = scmp.eq.s32.totalorder %s39, 0
      %s42 = sadd.s32 %s41, 1
      %s43 = scalar_select %p40, %s41, %s42
      %p46 = pneg %p40
      %p47 = scmp.eq.s32.totalorder %s17, 1
      %p48 = por %p46, %p47
      %p49 = scmp.ne.s32.totalorder %s41, %s44
      %p50 = scmp.eq.s32.totalorder %s17, 0
      %p51 = por %p49, %p50
      %p52 = scmp.ne.s32.totalorder %s41, %s44
      %p53 = scmp.eq.s32.totalorder %s22, 1
      %p54 = por %p52, %p53
      %p55 = scmp.ne.s32.totalorder %s44, %s45
      %p56 = scmp.eq.s32.totalorder %s22, 0
      %p57 = por %p55, %p56
      %p58 = scmp.ne.s32.totalorder %s44, %s45
      %p59 = scmp.eq.s32.totalorder %s23, 1
      %p60 = por %p58, %p59
      %p62 = scmp.ne.s32.totalorder %s45, %s61
      %p63 = scmp.eq.s32.totalorder %s23, 0
      %p64 = por %p62, %p63
      %s66 = sadd.s32 %s65, 1
      %p69 = scmp.eq.s32.totalorder %s17, 1
      %p70 = scmp.ne.s32.totalorder %s65, %s67
      %p71 = scmp.eq.s32.totalorder %s17, 0
      %p72 = por %p70, %p71
      %p73 = scmp.ne.s32.totalorder %s65, %s67
      %p74 = scmp.eq.s32.totalorder %s22, 1
      %p75 = por %p73, %p74
      %p76 = scmp.ne.s32.totalorder %s67, %s68
      %p77 = scmp.eq.s32.totalorder %s22, 0
      %p78 = por %p76, %p77
      %p79 = scmp.ne.s32.totalorder %s67, %s68
      %p80 = scmp.eq.s32.totalorder %s23, 1
      %p81 = por %p79, %p80
      %p83 = scmp.ne.s32.totalorder %s68, %s82
      %p84 = scmp.eq.s32.totalorder %s23, 0
      %p85 = por %p83, %p84
      %s87 = sadd.s32 %s86, 1
      %p90 = scmp.eq.s32.totalorder %s17, 1
      %p91 = scmp.ne.s32.totalorder %s86, %s88
      %p92 = scmp.eq.s32.totalorder %s17, 0
      %p93 = por %p91, %p92
      %p94 = scmp.ne.s32.totalorder %s86, %s88
      %p95 = scmp.eq.s32.totalorder %s22, 1
      %p96 = por %p94, %p95
      %p97 = scmp.ne.s32.totalorder %s88, %s89
      %p98 = scmp.eq.s32.totalorder %s22, 0
      %p99 = por %p97, %p98
      %p100 = scmp.ne.s32.totalorder %s88, %s89
      %p101 = scmp.eq.s32.totalorder %s23, 1
      %p102 = por %p100, %p101
      %p104 = scmp.ne.s32.totalorder %s89, %s103
      %p105 = scmp.eq.s32.totalorder %s23, 0
      %p106 = por %p104, %p105
      %s108 = sadd.s32 %s107, 1
      %p111 = scmp.eq.s32.totalorder %s17, 1
      %p112 = scmp.ne.s32.totalorder %s107, %s109
      %p113 = scmp.eq.s32.totalorder %s17, 0
      %p114 = por %p112, %p113
      %p115 = scmp.ne.s32.totalorder %s107, %s109
      %p116 = scmp.eq.s32.totalorder %s22, 1
      %p117 = por %p115, %p116
      %p118 = scmp.ne.s32.totalorder %s109, %s110
      %p119 = scmp.eq.s32.totalorder %s22, 0
      %p120 = por %p118, %p119
      %p121 = scmp.ne.s32.totalorder %s109, %s110
      %p122 = scmp.eq.s32.totalorder %s23, 1
      %p123 = por %p121, %p122
      %p125 = scmp.ne.s32.totalorder %s110, %s124
      %p126 = scmp.eq.s32.totalorder %s23, 0
      %p127 = por %p125, %p126
      %s129 = sadd.s32 %s128, 1
      %p132 = scmp.eq.s32.totalorder %s17, 1
      %p133 = scmp.ne.s32.totalorder %s128, %s130
      %p134 = scmp.eq.s32.totalorder %s17, 0
      %p135 = por %p133, %p134
      %p136 = scmp.ne.s32.totalorder %s128, %s130
      %p137 = scmp.eq.s32.totalorder %s22, 1
      %p138 = por %p136, %p137
      %p139 = scmp.ne.s32.totalorder %s130, %s131
      %p140 = scmp.eq.s32.totalorder %s22, 0
      %p141 = por %p139, %p140
      %p142 = scmp.ne.s32.totalorder %s130, %s131
      %p143 = scmp.eq.s32.totalorder %s23, 1
      %p144 = por %p142, %p143
      %p146 = scmp.ne.s32.totalorder %s131, %s145
      %p147 = scmp.eq.s32.totalorder %s23, 0
      %p148 = por %p146, %p147
      %s149 = ssub.s32 %s24, %s36
      %s150 = ssub.s32 %s25, %s32
      %s151 = sor.u32 %s149, %s150
      %p152 = scmp.eq.s32.totalorder %s151, 0
      %s154 = sadd.s32 %s153, 1
      %s155 = scalar_select %p152, %s153, %s154
      %p158 = pneg %p152
      %p159 = scmp.eq.s32.totalorder %s17, 1
      %p160 = por %p158, %p159
      %p161 = scmp.ne.s32.totalorder %s153, %s156
      %p162 = scmp.eq.s32.totalorder %s17, 0
      %p163 = por %p161, %p162
      %p164 = scmp.ne.s32.totalorder %s153, %s156
      %p165 = scmp.eq.s32.totalorder %s22, 1
      %p166 = por %p164, %p165
      %p167 = scmp.ne.s32.totalorder %s156, %s157
      %p168 = scmp.eq.s32.totalorder %s22, 0
      %p169 = por %p167, %p168
      %p170 = scmp.ne.s32.totalorder %s156, %s157
      %p171 = scmp.eq.s32.totalorder %s23, 1
      %p172 = por %p170, %p171
      %p174 = scmp.ne.s32.totalorder %s157, %s173
      %p175 = scmp.eq.s32.totalorder %s23, 0
      %p176 = por %p174, %p175
      %p177 = scmp.le.s32.totalorder 1, %s17
      %p178 = scmp.lt.s32.totalorder %s17, 3
      %p179 = pnand %p177, %p178
      %p180 = pneg %p179
      // Predicated region
      $region9: #{tpu_custom_call.1} parent=5 // pred_check
        _
      $region10: #{tpu_custom_call.1} parent=5 // pred_check_branch
        %182 = sbr.rel (%p179) target = $region12
      $region11: #{tpu_custom_call.1} parent=5 // pred_region
        %s183 = ssub.s32 %s17, 1
        // Predicated region
        $region13: #{tpu_custom_call.1} parent=11 // pred_check
          %p184 = pneg %p78
        $region14: #{tpu_custom_call.1} parent=11 // pred_check_branch
          %186 = sbr.rel (%p184) target = $region16
        $region15: #{tpu_custom_call.1} parent=11 // pred_region
          _
        $region16: #{tpu_custom_call.1} parent=11 // pred_fallthru
          _
        // Predicated region
        $region17: #{tpu_custom_call.1} parent=11 // pred_check
          %p187 = pneg %p99
        $region18: #{tpu_custom_call.1} parent=11 // pred_check_branch
          %189 = sbr.rel (%p187) target = $region20
        $region19: #{tpu_custom_call.1} parent=11 // pred_region
          _
        $region20: #{tpu_custom_call.1} parent=11 // pred_fallthru
          _
        // Predicated region
        $region21: #{tpu_custom_call.1} parent=11 // pred_check
          %p190 = pneg %p120
        $region22: #{tpu_custom_call.1} parent=11 // pred_check_branch
          %192 = sbr.rel (%p190) target = $region24
        $region23: #{tpu_custom_call.1} parent=11 // pred_region
          _
        $region24: #{tpu_custom_call.1} parent=11 // pred_fallthru
          _
        // Predicated region
        $region25: #{tpu_custom_call.1} parent=11 // pred_check
          %p193 = pneg %p141
        $region26: #{tpu_custom_call.1} parent=11 // pred_check_branch
          %195 = sbr.rel (%p193) target = $region28
        $region27: #{tpu_custom_call.1} parent=11 // pred_region
          _
        $region28: #{tpu_custom_call.1} parent=11 // pred_fallthru
          _
      $region12: #{tpu_custom_call.1} parent=5 // pred_fallthru
        _
      %p196 = scmp.lt.s32.totalorder %s17, 2
      // Predicated region
      $region29: #{tpu_custom_call.1} parent=5 // pred_check
        %p197 = pneg %p196
      $region30: #{tpu_custom_call.1} parent=5 // pred_check_branch
        %199 = sbr.rel (%p197) target = $region32
      $region31: #{tpu_custom_call.1} parent=5 // pred_region
        // Predicated region
        $region33: #{tpu_custom_call.1} parent=31 // pred_check
          %p200 = pneg %p51
        $region34: #{tpu_custom_call.1} parent=31 // pred_check_branch
          %202 = sbr.rel (%p200) target = $region36
        $region35: #{tpu_custom_call.1} parent=31 // pred_region
          %s203 = sand.u32 %s41, 1
          %s204 = scalar_lea.sflag [#allocation3], %s203
          %s205 = sand.u32 %s41, 1
          %s206 = smul.addr %s205, 64
          %s207 = scalar_lea.vmem [#allocation2], %s206
          %s208 = smul.u32 2, %s25
          %s210 = ssub.s32 1024, 1024
          %211 = vsyncadd %s204, %s210
          %s212 = smul.addr %s24, 8
          %s213 = sadd.s32 %s208, %s212
          %s214 = smul.addr %s213, 128
          %s215 = scalar_lea.hbm %s0, %s214
          %s216 = sshll.u32 %s207, 4
          %s217 = int_to_ptr.vmem [resolvable:$true] %s216
          %222 = dma.hbm_to_vmem [thread:$0]  %s215, 1024, %s217, %s204, 256, 256, 16
        $region36: #{tpu_custom_call.1} parent=31 // pred_fallthru
          _
      $region32: #{tpu_custom_call.1} parent=5 // pred_fallthru
        _
      %p223 = scmp.le.s32.totalorder 1, %s17
      %p224 = scmp.lt.s32.totalorder %s17, 3
      %p225 = pnand %p223, %p224
      %p226 = pneg %p225
      // Predicated region
      $region37: #{tpu_custom_call.1} parent=5 // pred_check
        _
      $region38: #{tpu_custom_call.1} parent=5 // pred_check_branch
        %228 = sbr.rel (%p225) target = $region40
      $region39: #{tpu_custom_call.1} parent=5 // pred_region
        %s229 = ssub.s32 %s17, 1
        %s230 = sand.u32 %s44, 1
        %s231 = scalar_lea.sflag [#allocation3], %s230
        %s232 = sand.u32 %s44, 1
        %s233 = smul.addr %s232, 64
        %s234 = scalar_lea.vmem [#allocation2], %s233
        // Predicated region
        $region41: #{tpu_custom_call.1} parent=39 // pred_check
          %p235 = pneg %p57
        $region42: #{tpu_custom_call.1} parent=39 // pred_check_branch
          %237 = sbr.rel (%p235) target = $region44
        $region43: #{tpu_custom_call.1} parent=39 // pred_region
          %238 = dma.done %s231, 1024
        $region44: #{tpu_custom_call.1} parent=39 // pred_fallthru
          _
        %s239 = sand.u32 %s44, 1
        %s240 = scalar_lea.sflag [#allocation3], %s239
        %s241 = sand.u32 %s44, 1
        %s242 = smul.addr %s241, 64
        %s243 = scalar_lea.vmem [#allocation2], %s242
        %p244 = pneg %p57
        %p245 = pneg %p54
        %p246 = pneg %p78
        %p247 = pneg %p75
        %p248 = pneg %p99
        %p249 = pneg %p96
        %p250 = pneg %p120
        %p251 = pneg %p117
        %p252 = pneg %p141
        %p253 = pneg %p138
        %p254 = pneg %p169
        %p255 = pneg %p166
        %s256 = sand.u32 %s156, 1
        %s257 = scalar_lea.sflag [#allocation4], %s256
        %s258 = sand.u32 %s156, 1
        %s259 = smul.addr %s258, 64
        %s260 = scalar_lea.vmem [#allocation5], %s259
        %s261 = smul.u32 2, %s27
        %s262 = smul.u32 2, %s27
        %v263 = vld [vmem:[%s1] sm:$0xf]
        %v264 = vld [vmem:[%s2] sm:$0xf]
        %v265 = vld [vmem:[%s3] sm:$0xff]
        %v266 = vld [vmem:[%s3 + $0x8] sm:$0xff]
        %v267 = vld [vmem:[%s3 + $0x10] sm:$0xff]
        %v268 = vld [vmem:[%s3 + $0x18] sm:$0xff]
        %v269 = vld [vmem:[%s4] sm:$0xff]
        %v270 = vld [vmem:[%s4 + $0x8] sm:$0xff]
        %v271 = vld [vmem:[%s4 + $0x10] sm:$0xff]
        %v272 = vld [vmem:[%s4 + $0x18] sm:$0xff]
        %v273 = vld [vmem:[%s234] sm:$0xff]
        %v274 = vld [vmem:[%s234 + $0x8] sm:$0xff]
        %v275 = vld [vmem:[%s234 + $0x10] sm:$0xff]
        %v276 = vld [vmem:[%s234 + $0x18] sm:$0xff]
        %v277 = vld [vmem:[%s234 + $0x20] sm:$0xff]
        %v278 = vld [vmem:[%s234 + $0x28] sm:$0xff]
        %v279 = vld [vmem:[%s234 + $0x30] sm:$0xff]
        %v280 = vld [vmem:[%s234 + $0x38] sm:$0xff]
        %282 = vset.pattern.permute.xlu0 0
        %283 = vperm.xlu0 %282, %v264
        %v284 = vpop.permute.xlu0 %283
        %vm286 = vcmask 261120
        %v288 = vsel %vm286, %v263, 0
        %290 = vmatprep.subr.mxu0 0.0
        %291 = vmatpush1.msra.mxu0 0.0
        %292 = vmatprep.subr.mxu0 0.0
        %293 = vmatpush1.msra.mxu0 0.0
        %294 = vmatprep.subr.mxu0 0.0
        %295 = vmatpush1.msra.mxu0 0.0
        %296 = vmatprep.subr.mxu0 0.0
        %297 = vmatpush1.msra.mxu0 0.0
        %298 = vmatprep.subr.mxu0 0.0
        %299 = vmatpush1.msra.mxu0 0.0
        %300 = vmatprep.subr.mxu0 0.0
        %301 = vmatpush1.msra.mxu0 0.0
        %302 = vmatprep.subr.mxu0 0.0
        %303 = vmatpush1.msra.mxu0 0.0
        %304 = vmatprep.subr.mxu0 0.0
        %305 = vmatpush1.msra.mxu0 0.0
        %306 = vmatprep.subr.mxu0 0.0
        %307 = vmatpush1.msra.mxu0 0.0
        %308 = vmatprep.subr.mxu0 0.0
        %309 = vmatpush1.msra.mxu0 0.0
        %310 = vmatprep.subr.mxu0 0.0
        %311 = vmatpush1.msra.mxu0 0.0
        %312 = vmatprep.subr.mxu0 0.0
        %313 = vmatpush1.msra.mxu0 0.0
        %314 = vmatprep.subr.mxu0 %v280
        %315 = vmatpush1.msra.mxu0 %v279
        %316 = vmatprep.subr.mxu0 %v278
        %317 = vmatpush1.msra.mxu0 %v277
        %318 = vmatprep.subr.mxu0 %v276
        %319 = vmatpush1.msra.mxu0 %v275
        %320 = vmatprep.subr.mxu0 %v274
        %321 = vmatpush1.msra.mxu0 %v273
        %322 = vmatprep.subr.mxu0 0.0
        %323 = vmatpush2.msra.mxu0 0.0
        %324 = vmatprep.subr.mxu0 0.0
        %325 = vmatpush2.msra.mxu0 0.0
        %326 = vmatprep.subr.mxu0 0.0
        %327 = vmatpush2.msra.mxu0 0.0
        %328 = vmatprep.subr.mxu0 0.0
        %329 = vmatpush2.msra.mxu0 0.0
        %330 = vmatprep.subr.mxu0 0.0
        %331 = vmatpush2.msra.mxu0 0.0
        %332 = vmatprep.subr.mxu0 0.0
        %333 = vmatpush2.msra.mxu0 0.0
        %334 = vmatprep.subr.mxu0 0.0
        %335 = vmatpush2.msra.mxu0 0.0
        %336 = vmatprep.subr.mxu0 0.0
        %337 = vmatpush2.msra.mxu0 0.0
        %338 = vmatprep.subr.mxu0 0.0
        %339 = vmatpush2.msra.mxu0 0.0
        %340 = vmatprep.subr.mxu0 0.0
        %341 = vmatpush2.msra.mxu0 0.0
        %342 = vmatprep.subr.mxu0 0.0
        %343 = vmatpush2.msra.mxu0 0.0
        %344 = vmatprep.subr.mxu0 0.0
        %345 = vmatpush2.msra.mxu0 0.0
        %346 = vmatprep.subr.mxu0 0.0
        %347 = vmatpush2.msra.mxu0 0.0
        %348 = vmatprep.subr.mxu0 0.0
        %349 = vmatpush2.msra.mxu0 0.0
        %350 = vmatprep.subr.mxu0 0.0
        %351 = vmatpush2.msra.mxu0 0.0
        %352 = vmatprep.subr.mxu0 0.0
        %353 = vmatpush2.msra.mxu0 0.0
        %354 = vmatprep.mubr.f32.mxu0 0.0
        %355 = vmatmul.mubr.f32.gmra.mxu0 %v288
        %v356 = vpop.f32.mrf.mxu0
        %v357 = vadd.f32 %v284, %v356
        %v358 = vpop.f32.mrf.mxu0
        %v359 = vadd.f32 %v284, %v358
        %360 = vdwg.mxu0
        %v361 = vmax.f32 %v357, 0.0
        %v362 = vmax.f32 %v359, 0.0
        %364 = vset.pattern.permute.xlu0 0
        %365 = vperm.xlu0 %364, %v269
        %v366 = vpop.permute.xlu0 %365
        %369 = vset.pattern.permute.xlu0 0
        %370 = vperm.xlu0 %369, %v270
        %v371 = vpop.permute.xlu0 %370
        %374 = vset.pattern.permute.xlu0 0
        %375 = vperm.xlu0 %374, %v271
        %v376 = vpop.permute.xlu0 %375
        %379 = vset.pattern.permute.xlu0 0
        %380 = vperm.xlu0 %379, %v272
        %v381 = vpop.permute.xlu0 %380
        %vm383 = vcmask 31744
        %v385 = vsel %vm383, %v265, 0
        %v388 = vsel %vm383, %v266, 0
        %v391 = vsel %vm383, %v267, 0
        %v394 = vsel %vm383, %v268, 0
        %vm396 = vcmask 1043456
        %v398 = vsel %vm396, %v361, 0
        %v401 = vsel %vm396, %v362, 0
        %403 = vmatprep.subr.mxu0 0.0
        %404 = vmatpush1.msra.mxu0 0.0
        %405 = vmatprep.subr.mxu0 0.0
        %406 = vmatpush1.msra.mxu0 0.0
        %407 = vmatprep.subr.mxu0 0.0
        %408 = vmatpush1.msra.mxu0 0.0
        %409 = vmatprep.subr.mxu0 0.0
        %410 = vmatpush1.msra.mxu0 0.0
        %411 = vmatprep.subr.mxu0 0.0
        %412 = vmatpush1.msra.mxu0 0.0
        %413 = vmatprep.subr.mxu0 0.0
        %414 = vmatpush1.msra.mxu0 0.0
        %415 = vmatprep.subr.mxu0 0.0
        %416 = vmatpush1.msra.mxu0 0.0
        %417 = vmatprep.subr.mxu0 0.0
        %418 = vmatpush1.msra.mxu0 0.0
        %419 = vmatprep.subr.mxu0 0.0
        %420 = vmatpush1.msra.mxu0 0.0
        %421 = vmatprep.subr.mxu0 0.0
        %422 = vmatpush1.msra.mxu0 0.0
        %423 = vmatprep.subr.mxu0 0.0
        %424 = vmatpush1.msra.mxu0 0.0
        %425 = vmatprep.subr.mxu0 0.0
        %426 = vmatpush1.msra.mxu0 0.0
        %427 = vmatprep.subr.mxu0 0.0
        %428 = vmatpush1.msra.mxu0 0.0
        %429 = vmatprep.subr.mxu0 0.0
        %430 = vmatpush1.msra.mxu0 0.0
        %431 = vmatprep.subr.mxu0 0.0
        %432 = vmatpush1.msra.mxu0 0.0
        %433 = vmatprep.subr.mxu0 %v401
        %434 = vmatpush1.msra.mxu0 %v398
        %435 = vmatprep.subr.mxu0 0.0
        %436 = vmatpush2.msra.mxu0 0.0
        %437 = vmatprep.subr.mxu0 0.0
        %438 = vmatpush2.msra.mxu0 0.0
        %439 = vmatprep.subr.mxu0 0.0
        %440 = vmatpush2.msra.mxu0 0.0
        %441 = vmatprep.subr.mxu0 0.0
        %442 = vmatpush2.msra.mxu0 0.0
        %443 = vmatprep.subr.mxu0 0.0
        %444 = vmatpush2.msra.mxu0 0.0
        %445 = vmatprep.subr.mxu0 0.0
        %446 = vmatpush2.msra.mxu0 0.0
        %447 = vmatprep.subr.mxu0 0.0
        %448 = vmatpush2.msra.mxu0 0.0
        %449 = vmatprep.subr.mxu0 0.0
        %450 = vmatpush2.msra.mxu0 0.0
        %451 = vmatprep.subr.mxu0 0.0
        %452 = vmatpush2.msra.mxu0 0.0
        %453 = vmatprep.subr.mxu0 0.0
        %454 = vmatpush2.msra.mxu0 0.0
        %455 = vmatprep.subr.mxu0 0.0
        %456 = vmatpush2.msra.mxu0 0.0
        %457 = vmatprep.subr.mxu0 0.0
        %458 = vmatpush2.msra.mxu0 0.0
        %459 = vmatprep.subr.mxu0 0.0
        %460 = vmatpush2.msra.mxu0 0.0
        %461 = vmatprep.subr.mxu0 0.0
        %462 = vmatpush2.msra.mxu0 0.0
        %463 = vmatprep.subr.mxu0 0.0
        %464 = vmatpush2.msra.mxu0 0.0
        %465 = vmatprep.subr.mxu0 0.0
        %466 = vmatpush2.msra.mxu0 0.0
        %467 = vmatprep.mubr.f32.mxu0 0.0
        %468 = vmatmul.mubr.f32.gmra.mxu0 %v385
        %v469 = vpop.f32.mrf.mxu0
        %v470 = vadd.f32 %v366, %v469
        %v471 = vpop.f32.mrf.mxu0
        %v472 = vadd.f32 %v366, %v471
        %473 = vmatprep.mubr.f32.mxu0 0.0
        %474 = vmatmul.mubr.f32.gmra.mxu0 %v388
        %v475 = vpop.f32.mrf.mxu0
        %v476 = vadd.f32 %v371, %v475
        %v477 = vpop.f32.mrf.mxu0
        %v478 = vadd.f32 %v371, %v477
        %479 = vmatprep.mubr.f32.mxu0 0.0
        %480 = vmatmul.mubr.f32.gmra.mxu0 %v391
        %v481 = vpop.f32.mrf.mxu0
        %v482 = vadd.f32 %v376, %v481
        %v483 = vpop.f32.mrf.mxu0
        %v484 = vadd.f32 %v376, %v483
        %485 = vmatprep.mubr.f32.mxu0 0.0
        %486 = vmatmul.mubr.f32.gmra.mxu0 %v394
        %v487 = vpop.f32.mrf.mxu0
        %v488 = vadd.f32 %v381, %v487
        %v489 = vpop.f32.mrf.mxu0
        %v490 = vadd.f32 %v381, %v489
        %491 = vdwg.mxu0
        %v492 = vmul.f32 %v470, 0.5
        %v493 = vmul.f32 %v472, 0.5
        %v494 = vmul.f32 %v476, 0.5
        %v495 = vmul.f32 %v478, 0.5
        %v496 = vmul.f32 %v482, 0.5
        %v497 = vmul.f32 %v484, 0.5
        %v498 = vmul.f32 %v488, 0.5
        %v499 = vmul.f32 %v490, 0.5
        %v500 = vtanh.pop %v492
        %v501 = vtanh.pop %v493
        %v502 = vtanh.pop %v494
        %v503 = vtanh.pop %v495
        %v504 = vtanh.pop %v496
        %v505 = vtanh.pop %v497
        %v506 = vtanh.pop %v498
        %v507 = vtanh.pop %v499
        %v508 = vmul.f32 %v500, 0.5
        %v509 = vmul.f32 %v501, 0.5
        %v510 = vmul.f32 %v502, 0.5
        %v511 = vmul.f32 %v503, 0.5
        %v512 = vmul.f32 %v504, 0.5
        %v513 = vmul.f32 %v505, 0.5
        %v514 = vmul.f32 %v506, 0.5
        %v515 = vmul.f32 %v507, 0.5
        %v516 = vadd.f32 %v508, 0.5
        %v517 = vadd.f32 %v509, 0.5
        %v518 = vadd.f32 %v510, 0.5
        %v519 = vadd.f32 %v511, 0.5
        %v520 = vadd.f32 %v512, 0.5
        %v521 = vadd.f32 %v513, 0.5
        %v522 = vadd.f32 %v514, 0.5
        %v523 = vadd.f32 %v515, 0.5
        %524 = vst [vmem:[%s260] sm:$0xff] %v516
        %525 = vst [vmem:[%s260 + $0x8] sm:$0xff] %v517
        %526 = vst [vmem:[%s260 + $0x10] sm:$0xff] %v518
        %527 = vst [vmem:[%s260 + $0x18] sm:$0xff] %v519
        %528 = vst [vmem:[%s260 + $0x20] sm:$0xff] %v520
        %529 = vst [vmem:[%s260 + $0x28] sm:$0xff] %v521
        %530 = vst [vmem:[%s260 + $0x30] sm:$0xff] %v522
        %531 = vst [vmem:[%s260 + $0x38] sm:$0xff] %v523
        %s532 = sand.u32 %s156, 1
        %s533 = scalar_lea.sflag [#allocation4], %s532
        %s534 = sand.u32 %s156, 1
        %s535 = smul.addr %s534, 64
        %s536 = scalar_lea.vmem [#allocation5], %s535
        // Predicated region
        $region45: #{tpu_custom_call.1} parent=39 // pred_check
          %p537 = pneg %p166
        $region46: #{tpu_custom_call.1} parent=39 // pred_check_branch
          %539 = sbr.rel (%p537) target = $region48
        $region47: #{tpu_custom_call.1} parent=39 // pred_region
          %s540 = smul.u32 2, %s27
          %s542 = ssub.s32 1024, 1024
          %543 = vsyncadd %s533, %s542
          %s544 = smul.addr %s26, 8
          %s545 = sadd.s32 %s540, %s544
          %s546 = smul.addr %s545, 128
          %s547 = scalar_lea.hbm %s5, %s546
          %s548 = sshll.u32 %s536, 4
          %s549 = int_to_ptr.vmem [resolvable:$true] %s548
          %554 = dma.vmem_to_hbm [thread:$0]  %s549, 1024, %s547, %s533, 256, 256, 16
        $region48: #{tpu_custom_call.1} parent=39 // pred_fallthru
          _
      $region40: #{tpu_custom_call.1} parent=5 // pred_fallthru
        _
      %p555 = scmp.le.s32.totalorder 2, %s17
      // Predicated region
      $region49: #{tpu_custom_call.1} parent=5 // pred_check
        %p556 = pneg %p555
      $region50: #{tpu_custom_call.1} parent=5 // pred_check_branch
        %558 = sbr.rel (%p556) target = $region52
      $region51: #{tpu_custom_call.1} parent=5 // pred_region
        %s559 = ssub.s32 %s17, 2
        // Predicated region
        $region53: #{tpu_custom_call.1} parent=51 // pred_check
          %p560 = pneg %p172
        $region54: #{tpu_custom_call.1} parent=51 // pred_check_branch
          %562 = sbr.rel (%p560) target = $region56
        $region55: #{tpu_custom_call.1} parent=51 // pred_region
          %s563 = sand.u32 %s157, 1
          %s564 = scalar_lea.sflag [#allocation4], %s563
          %s565 = sand.u32 %s157, 1
          %s566 = smul.addr %s565, 64
          %s567 = scalar_lea.vmem [#allocation5], %s566
          %568 = dma.done %s564, 1024
        $region56: #{tpu_custom_call.1} parent=51 // pred_fallthru
          _
      $region52: #{tpu_custom_call.1} parent=5 // pred_fallthru
        _
    $region6: #{tpu_custom_call.1} parent=1 // loop_footer
      %s21 = sadd.s32 1, %s17
    $region7: #{tpu_custom_call.1} parent=1 // loop_footer_branch
      %16 = sbr.rel target = $region3
    $region8: #{tpu_custom_call.1} parent=1 // loop_exit
      _
    %569 = vsyncpa [#allocation3], 1
    %s570 = scalar_lea.sflag [#allocation3], 1
    %571 = vsyncpa %s570, 1
    %572 = vsyncpa [#allocation4], 1
    %s573 = scalar_lea.sflag [#allocation4], 1
    %574 = vsyncpa %s573, 1

</llo_original>
